<compile_context>
chip_gen: v7x
topology: tpu7x:2x2x1
jax: 0.10.0
libtpu: 0.0.40
codegen_flags: <defaults>
</compile_context>

<pallas_src>
import math

import jax
import jax.numpy as jnp
from jax.experimental import pallas as pl
from jax.experimental.pallas import tpu as pltpu

_LANES = 128


# ------------------------------- kernel --------------------------------------
def _explain_fwd_kernel(nidx_ref, adj_ref, mask_ref, x_ref, fmask_ref,
                        w1_ref, b1_ref, w2_ref, b2_ref, wp_ref, bp_ref,
                        madj_ref, res_ref):
    n = adj_ref.shape[0]
    idx = nidx_ref[0]

    # masked adjacency: sigmoid -> symmetrize -> * adj -> zero diagonal (iota compare,
    # no dense (1 - eye) input needed)
    m = jax.nn.sigmoid(mask_ref[...])
    sym = (m + m.T) * 0.5
    rows = jax.lax.broadcasted_iota(jnp.int32, (n, n), 0)
    cols = jax.lax.broadcasted_iota(jnp.int32, (n, n), 1)
    masked_adj = jnp.where(rows == cols, 0.0, adj_ref[...] * sym)
    madj_ref[...] = masked_adj

    # feature masking: x * sigmoid(feat_mask), broadcast over nodes (f32 elementwise)
    fm = jax.nn.sigmoid(fmask_ref[...])                       # [1, F]
    xm = x_ref[...] * fm                                      # [N, F]

    # GCN layer 1 over the whole graph: relu((A @ xm) @ W1 + b1)
    # bf16 MXU operands, f32 accumulation; bias/relu stay f32.
    ax = jnp.dot(masked_adj.astype(jnp.bfloat16), xm.astype(jnp.bfloat16),
                 preferred_element_type=jnp.float32)          # [N, F]
    h1 = jnp.dot(ax.astype(jnp.bfloat16), w1_ref[...],
                 preferred_element_type=jnp.float32) + b1_ref[...]
    h1 = jnp.maximum(h1, 0.0)                                 # [N, Hp]

    # GCN layer 2 + prediction head only for the requested node:
    # ypred[idx] = relu(A[idx, :] @ h1 @ W2 + b2) @ Wp + bp
    a_row = madj_ref[pl.ds(idx, 1), :]                        # [1, N]
    r = jnp.dot(a_row.astype(jnp.bfloat16), h1.astype(jnp.bfloat16),
                preferred_element_type=jnp.float32)           # [1, Hp]
    h2 = jnp.dot(r.astype(jnp.bfloat16), w2_ref[...],
                 preferred_element_type=jnp.float32) + b2_ref[...]
    h2 = jnp.maximum(h2, 0.0)                                 # [1, Hp]
    logits = jnp.dot(h2.astype(jnp.bfloat16), wp_ref[...],
                     preferred_element_type=jnp.float32) + bp_ref[...]   # [1, C]

    # softmax over the class vector (exact division -> sum stays 1)
    z = logits - jnp.max(logits, axis=-1, keepdims=True)
    p = jnp.exp(z)
    res_ref[...] = p / jnp.sum(p, axis=-1, keepdims=True)


# ------------------------------ wrapper ---------------------------------------
def explain_forward_pallas(node_idx, adj2d, mask, x2d, feat_mask, padded):
    n = adj2d.shape[0]
    f = x2d.shape[1]
    hp = padded["w1"].shape[1]
    c = padded["wp"].shape[1]

    flops = 2 * (n * n * f + n * f * hp + n * hp + hp * hp + hp * c) + 5 * n * n
    bytes_accessed = (4 * (2 * n * n + n * f + f + 2 * hp + c)   # f32 tensors + biases
                      + 2 * (f * hp + hp * hp + hp * c)          # bf16 weights
                      + 4 * (n * n + c))                         # outputs
    cost = pl.CostEstimate(flops=flops,
                           transcendentals=n * n + f + c,
                           bytes_accessed=bytes_accessed)

    smem = pl.BlockSpec(memory_space=pltpu.MemorySpace.SMEM)
    vmem = pl.BlockSpec(memory_space=pltpu.MemorySpace.VMEM)

    masked_adj, res = pl.pallas_call(
        _explain_fwd_kernel,
        out_shape=(jax.ShapeDtypeStruct((n, n), jnp.float32),
                   jax.ShapeDtypeStruct((1, c), jnp.float32)),
        in_specs=[smem] + [vmem] * 10,
        out_specs=(vmem, vmem),
        compiler_params=pltpu.CompilerParams(vmem_limit_bytes=32 * 1024 * 1024),
        cost_estimate=cost,
    )(jnp.asarray([node_idx], jnp.int32), adj2d, mask, x2d,
      feat_mask.reshape(1, f),
      padded["w1"], padded["b1"], padded["w2"], padded["b2"],
      padded["wp"], padded["bp"])
    return masked_adj, res


class ExplainModuleJAX:
    """JAX/Pallas re-implementation of ExplainModule.forward (graph_mode=False,
    mask_bias=False, mask_act='sigmoid', use_sigmoid=True, marginalize=False)."""

    def __init__(self, adj, x, model_params, graph_idx=0):
        self.adj = adj                      # [1, N, N]
        self.x = x                          # [1, N, F]
        self.graph_idx = graph_idx
        n = adj.shape[1]
        f = x.shape[-1]
        # construct_edge_mask(init_strategy='normal'):
        #   std = calculate_gain('relu') * sqrt(2 / (N + N)),  mean = 1.0
        std = math.sqrt(2.0) * math.sqrt(2.0 / (n + n))
        self.mask = 1.0 + std * jax.random.normal(
            jax.random.PRNGKey(123), (n, n), jnp.float32)
        # construct_feat_mask(init_strategy='constant'): zeros
        self.feat_mask = jnp.zeros((f,), jnp.float32)

        # lane-dense (128-wide) zero-padded weights, pre-cast to bf16 for the MXU;
        # biases stay f32 (zero padding keeps the math exactly equivalent).
        h = model_params["w1"].shape[1]
        c = model_params["wp"].shape[1]
        hp = max(_LANES, ((h + _LANES - 1) // _LANES) * _LANES)
        f32, bf16 = jnp.float32, jnp.bfloat16
        self._padded = {
            "w1": jnp.zeros((f, hp), f32).at[:, :h].set(model_params["w1"]).astype(bf16),
            "b1": jnp.zeros((1, hp), f32).at[:, :h].set(model_params["b1"].reshape(1, -1)),
            "w2": jnp.zeros((hp, hp), f32).at[:h, :h].set(model_params["w2"]).astype(bf16),
            "b2": jnp.zeros((1, hp), f32).at[:, :h].set(model_params["b2"].reshape(1, -1)),
            "wp": jnp.zeros((hp, c), f32).at[:h, :].set(model_params["wp"]).astype(bf16),
            "bp": model_params["bp"].reshape(1, c).astype(f32),
        }
        self.masked_adj = None

    def forward(self, node_idx):
        masked_adj2d, res2d = explain_forward_pallas(
            node_idx, self.adj[self.graph_idx], self.mask,
            self.x[self.graph_idx], self.feat_mask, self._padded)
        self.masked_adj = masked_adj2d[None]                 # [1, N, N]
        # TODO(synk): self.model in the original code is an external dumped GNN that also
        # returns attention weights (adj_att); here it is a deterministic in-script
        # 2-layer GCN and adj_att is stood in by the masked adjacency.
        adj_att = self.masked_adj
        return res2d[0], adj_att                             # softmaxed class vector, [C]


# ------------------------------- driver ---------------------------------------
if __name__ == "__main__":
    N, F, H, C = 64, 16, 32, 8   # nodes, feat dim, hidden dim, classes

    key = jax.random.PRNGKey(0)
    k_adj, k_x, k_w1, k_w2, k_wp = jax.random.split(key, 5)

    # deterministic symmetric binary adjacency with zero diagonal
    raw = (jax.random.uniform(k_adj, (N, N)) > 0.7).astype(jnp.float32)
    adj2d = jnp.maximum(raw, raw.T) * (1.0 - jnp.eye(N, dtype=jnp.float32))
    adj = adj2d[None]                                        # [1, N, N]

    x = jax.random.normal(k_x, (1, N, F), jnp.float32)       # [1, N, F]

    model_params = {
        "w1": 0.1 * jax.random.normal(k_w1, (F, H), jnp.float32),
        "b1": jnp.zeros((H,), jnp.float32),
        "w2": 0.1 * jax.random.normal(k_w2, (H, H), jnp.float32),
        "b2": jnp.zeros((H,), jnp.float32),
        "wp": 0.1 * jax.random.normal(k_wp, (H, C), jnp.float32),
        "bp": jnp.zeros((C,), jnp.float32),
    }

    module = ExplainModuleJAX(adj, x, model_params, graph_idx=0)
    res, adj_att = module.forward(node_idx=3)
    res = jax.block_until_ready(res)
    adj_att = jax.block_until_ready(adj_att)

    assert res.shape == (C,)
    assert adj_att.shape == (1, N, N)
    assert bool(jnp.all(jnp.isfinite(res)))
    assert abs(float(jnp.sum(res)) - 1.0) < 1e-4

    print("KERNEL_OK")
</pallas_src>

<mosaic_0001>
module attributes {stable_mosaic.version = 11 : i64} {
  func.func @_explain_fwd_kernel(%arg0: memref<1xi32, #tpu.memory_space<smem>>, %arg1: memref<64x64xf32, #tpu.memory_space<vmem>>, %arg2: memref<64x64xf32, #tpu.memory_space<vmem>>, %arg3: memref<64x16xf32, #tpu.memory_space<vmem>>, %arg4: memref<1x16xf32, #tpu.memory_space<vmem>>, %arg5: memref<16x128xbf16, #tpu.memory_space<vmem>>, %arg6: memref<1x128xf32, #tpu.memory_space<vmem>>, %arg7: memref<128x128xbf16, #tpu.memory_space<vmem>>, %arg8: memref<1x128xf32, #tpu.memory_space<vmem>>, %arg9: memref<128x8xbf16, #tpu.memory_space<vmem>>, %arg10: memref<1x8xf32, #tpu.memory_space<vmem>>, %arg11: memref<64x64xf32, #tpu.memory_space<vmem>>, %arg12: memref<1x8xf32, #tpu.memory_space<vmem>>) attributes {dimension_semantics = [], scalar_prefetch = 0 : i64, scratch_operands = 0 : i64, tpu.core_type = #tpu.core_type<tc>} {
    %c0 = arith.constant 0 : index
    %0 = memref.load %arg0[%c0] : memref<1xi32, #tpu.memory_space<smem>>
    %c0_0 = arith.constant 0 : index
    %c0_1 = arith.constant 0 : index
    %1 = vector.load %arg2[%c0_0, %c0_1] : memref<64x64xf32, #tpu.memory_space<vmem>>, vector<64x64xf32>
    %2 = arith.negf %1 : vector<64x64xf32>
    %3 = math.exp %2 : vector<64x64xf32>
    %cst = arith.constant 1.000000e+00 : f32
    %4 = vector.broadcast %cst : f32 to vector<64x64xf32>
    %5 = arith.addf %4, %3 : vector<64x64xf32>
    %6 = arith.divf %4, %5 : vector<64x64xf32>
    %7 = tpu.transpose %6, [1, 0] : vector<64x64xf32> -> vector<64x64xf32>
    %8 = arith.addf %6, %7 : vector<64x64xf32>
    %cst_2 = arith.constant 5.000000e-01 : f32
    %9 = vector.broadcast %cst_2 : f32 to vector<64x64xf32>
    %10 = arith.mulf %8, %9 : vector<64x64xf32>
    %11 = tpu.iota {dimensions = array<i32: 0>} : vector<64x64xi32>
    %12 = tpu.iota {dimensions = array<i32: 1>} : vector<64x64xi32>
    %13 = arith.cmpi eq, %11, %12 : vector<64x64xi32>
    %c0_3 = arith.constant 0 : index
    %c0_4 = arith.constant 0 : index
    %14 = vector.load %arg1[%c0_3, %c0_4] : memref<64x64xf32, #tpu.memory_space<vmem>>, vector<64x64xf32>
    %15 = arith.mulf %14, %10 : vector<64x64xf32>
    %cst_5 = arith.constant 0.000000e+00 : f32
    %16 = vector.broadcast %cst_5 : f32 to vector<64x64xf32>
    %17 = arith.select %13, %16, %15 : vector<64x64xi1>, vector<64x64xf32>
    %c0_6 = arith.constant 0 : index
    %c0_7 = arith.constant 0 : index
    %18 = vector.load %arg11[%c0_6, %c0_7] : memref<64x64xf32, #tpu.memory_space<vmem>>, vector<64x64xf32>
    tpu.vector_store %arg11[%c0_6, %c0_7], %17 {strides = array<i32>} : memref<64x64xf32, #tpu.memory_space<vmem>>, vector<64x64xf32>,
    %c0_8 = arith.constant 0 : index
    %c0_9 = arith.constant 0 : index
    %19 = vector.load %arg4[%c0_8, %c0_9] : memref<1x16xf32, #tpu.memory_space<vmem>>, vector<1x16xf32>
    %20 = arith.negf %19 : vector<1x16xf32>
    %21 = math.exp %20 : vector<1x16xf32>
    %cst_10 = arith.constant 1.000000e+00 : f32
    %22 = vector.broadcast %cst_10 : f32 to vector<1x16xf32>
    %23 = arith.addf %22, %21 : vector<1x16xf32>
    %24 = arith.divf %22, %23 : vector<1x16xf32>
    %c0_11 = arith.constant 0 : index
    %c0_12 = arith.constant 0 : index
    %25 = vector.load %arg3[%c0_11, %c0_12] : memref<64x16xf32, #tpu.memory_space<vmem>>, vector<64x16xf32>
    %26 = vector.broadcast %24 : vector<1x16xf32> to vector<64x16xf32>
    %27 = arith.mulf %25, %26 : vector<64x16xf32>
    %28 = arith.truncf %17 : vector<64x64xf32> to vector<64x64xbf16>
    %29 = arith.truncf %27 : vector<64x16xf32> to vector<64x16xbf16>
    %cst_13 = arith.constant dense<0.000000e+00> : vector<64x16xf32>
    %30 = tpu.matmul %28, %29, %cst_13 {dimension_numbers = #tpu.dot_dimension_numbers<[1], [0], [0], [1], [0, 0, 1, 1], [], []>} : vector<64x64xbf16>, vector<64x16xbf16>, vector<64x16xf32> -> vector<64x16xf32>
    %31 = arith.truncf %30 : vector<64x16xf32> to vector<64x16xbf16>
    %c0_14 = arith.constant 0 : index
    %c0_15 = arith.constant 0 : index
    %32 = vector.load %arg5[%c0_14, %c0_15] : memref<16x128xbf16, #tpu.memory_space<vmem>>, vector<16x128xbf16>
    %cst_16 = arith.constant dense<0.000000e+00> : vector<64x128xf32>
    %33 = tpu.matmul %31, %32, %cst_16 {dimension_numbers = #tpu.dot_dimension_numbers<[1], [0], [0], [1], [0, 0, 1, 1], [], []>} : vector<64x16xbf16>, vector<16x128xbf16>, vector<64x128xf32> -> vector<64x128xf32>
    %c0_17 = arith.constant 0 : index
    %c0_18 = arith.constant 0 : index
    %34 = vector.load %arg6[%c0_17, %c0_18] : memref<1x128xf32, #tpu.memory_space<vmem>>, vector<1x128xf32>
    %35 = vector.broadcast %34 : vector<1x128xf32> to vector<64x128xf32>
    %36 = arith.addf %33, %35 : vector<64x128xf32>
    %cst_19 = arith.constant 0.000000e+00 : f32
    %37 = vector.broadcast %cst_19 : f32 to vector<64x128xf32>
    %38 = arith.maximumf %36, %37 : vector<64x128xf32>
    %39 = arith.index_cast %0 : i32 to index
    %c0_20 = arith.constant 0 : index
    %40 = vector.load %arg11[%39, %c0_20] : memref<64x64xf32, #tpu.memory_space<vmem>>, vector<1x64xf32>
    %41 = arith.truncf %40 : vector<1x64xf32> to vector<1x64xbf16>
    %42 = arith.truncf %38 : vector<64x128xf32> to vector<64x128xbf16>
    %cst_21 = arith.constant dense<0.000000e+00> : vector<1x128xf32>
    %43 = tpu.matmul %41, %42, %cst_21 {dimension_numbers = #tpu.dot_dimension_numbers<[1], [0], [0], [1], [0, 0, 1, 1], [], []>} : vector<1x64xbf16>, vector<64x128xbf16>, vector<1x128xf32> -> vector<1x128xf32>
    %44 = arith.truncf %43 : vector<1x128xf32> to vector<1x128xbf16>
    %c0_22 = arith.constant 0 : index
    %c0_23 = arith.constant 0 : index
    %45 = vector.load %arg7[%c0_22, %c0_23] : memref<128x128xbf16, #tpu.memory_space<vmem>>, vector<128x128xbf16>
    %cst_24 = arith.constant dense<0.000000e+00> : vector<1x128xf32>
    %46 = tpu.matmul %44, %45, %cst_24 {dimension_numbers = #tpu.dot_dimension_numbers<[1], [0], [0], [1], [0, 0, 1, 1], [], []>} : vector<1x128xbf16>, vector<128x128xbf16>, vector<1x128xf32> -> vector<1x128xf32>
    %c0_25 = arith.constant 0 : index
    %c0_26 = arith.constant 0 : index
    %47 = vector.load %arg8[%c0_25, %c0_26] : memref<1x128xf32, #tpu.memory_space<vmem>>, vector<1x128xf32>
    %48 = arith.addf %46, %47 : vector<1x128xf32>
    %cst_27 = arith.constant 0.000000e+00 : f32
    %49 = vector.broadcast %cst_27 : f32 to vector<1x128xf32>
    %50 = arith.maximumf %48, %49 : vector<1x128xf32>
    %51 = arith.truncf %50 : vector<1x128xf32> to vector<1x128xbf16>
    %c0_28 = arith.constant 0 : index
    %c0_29 = arith.constant 0 : index
    %52 = vector.load %arg9[%c0_28, %c0_29] : memref<128x8xbf16, #tpu.memory_space<vmem>>, vector<128x8xbf16>
    %cst_30 = arith.constant dense<0.000000e+00> : vector<1x8xf32>
    %53 = tpu.matmul %51, %52, %cst_30 {dimension_numbers = #tpu.dot_dimension_numbers<[1], [0], [0], [1], [0, 0, 1, 1], [], []>} : vector<1x128xbf16>, vector<128x8xbf16>, vector<1x8xf32> -> vector<1x8xf32>
    %c0_31 = arith.constant 0 : index
    %c0_32 = arith.constant 0 : index
    %54 = vector.load %arg10[%c0_31, %c0_32] : memref<1x8xf32, #tpu.memory_space<vmem>>, vector<1x8xf32>
    %55 = arith.addf %53, %54 : vector<1x8xf32>
    %cst_33 = arith.constant dense<0xFF800000> : vector<1xf32>
    %56 = vector.multi_reduction <maximumf>, %55, %cst_33 [1] : vector<1x8xf32> to vector<1xf32>
    %57 = vector.shape_cast %56 : vector<1xf32> to vector<1x1xf32>
    %58 = vector.broadcast %57 : vector<1x1xf32> to vector<1x8xf32>
    %59 = arith.subf %55, %58 : vector<1x8xf32>
    %60 = math.exp %59 : vector<1x8xf32>
    %cst_34 = arith.constant dense<0.000000e+00> : vector<1xf32>
    %61 = vector.multi_reduction <add>, %60, %cst_34 [1] : vector<1x8xf32> to vector<1xf32>
    %62 = vector.shape_cast %61 : vector<1xf32> to vector<1x1xf32>
    %63 = vector.broadcast %62 : vector<1x1xf32> to vector<1x8xf32>
    %64 = arith.divf %60, %63 : vector<1x8xf32>
    %c0_35 = arith.constant 0 : index
    %c0_36 = arith.constant 0 : index
    %65 = vector.load %arg12[%c0_35, %c0_36] : memref<1x8xf32, #tpu.memory_space<vmem>>, vector<1x8xf32>
    tpu.vector_store %arg12[%c0_35, %c0_36], %64 {strides = array<i32>} : memref<1x8xf32, #tpu.memory_space<vmem>>, vector<1x8xf32>,
    return
  }
}

</mosaic_0001>

<llo_original>
// kernel: tpu_custom_call.1
$region0: #{tpu_custom_call.1}
  #allocation0 [shape = 'u32[]', space=smem, size = 0x4, offset = 0x4, fixed_abs, tag = 'smem constant byte address 0x4 - core index']
  #allocation1 [shape = 'u32[144,128]{1,0:T(1,128)}', space=vmem, size = 0x12000, scoped, tag = 'internal scratch']
  #allocation2 [shape = 's32[1]{0:T(128)S(6)}', space=smem, size = 0x200, scoped, tag = 'scoped memory for tpu_custom_call.1']
  %s0 = inlined_call_operand.<no memory space> [shape: s32[1], index: 0, kind: input, shape index: {}]
  %s1 = inlined_call_operand.vmem [shape: f32[64,64], index: 1, kind: input, shape index: {}]
  %s2 = inlined_call_operand.vmem [shape: f32[64,64], index: 2, kind: input, shape index: {}]
  %s3 = inlined_call_operand.vmem [shape: f32[64,16], index: 3, kind: input, shape index: {}]
  %s4 = inlined_call_operand.vmem [shape: f32[1,16], index: 4, kind: input, shape index: {}]
  %s5 = inlined_call_operand.vmem [shape: bf16[16,128], index: 5, kind: input, shape index: {}]
  %s6 = inlined_call_operand.vmem [shape: f32[1,128], index: 6, kind: input, shape index: {}]
  %s7 = inlined_call_operand.hbm [shape: bf16[128,128], index: 7, kind: input, shape index: {}]
  %s8 = inlined_call_operand.vmem [shape: f32[1,128], index: 8, kind: input, shape index: {}]
  %s9 = inlined_call_operand.vmem [shape: bf16[128,8], index: 9, kind: input, shape index: {}]
  %s10 = inlined_call_operand.vmem [shape: f32[1,8], index: 10, kind: input, shape index: {}]
  %s11 = inlined_call_operand.hbm [shape: f32[64,64], index: 11, kind: output, shape index: {0}]
  %s12 = inlined_call_operand.hbm [shape: f32[1,8], index: 12, kind: output, shape index: {1}]
  %13 = xla_tuple %s11, %s12
  %s14 = sld [smem:[#allocation0]]
  $region66: #{tpu_custom_call.1} parent=0
    _
  %s16 = ssub.s32 1, %s14
  %s17 = scalar_select 0, %s16, %s14
  %18 = sst [smem:[#allocation2]] %s0
  $region1: #{tpu_custom_call.1} parent=0
    #allocation3 [shape = 'u8[32768]{0}', space=vmem, size = 0x8000, scoped, tag = 'input window, operand 7, single buffered']
    #allocation4 [shape = 's32[1]{0}', space=sflag, size = 0x4, scoped, tag = 'scoped memory for tpu_custom_call.1']
    #allocation5 [shape = 's32[1]{0}', space=sflag, size = 0x4, scoped, tag = 'scoped memory for tpu_custom_call.1']
    #allocation6 [shape = 'u8[32768]{0}', space=vmem, size = 0x8000, scoped, tag = 'output window, operand 0, single buffered']
    #allocation7 [shape = 'u8[512]{0}', space=vmem, size = 0x400, scoped, tag = 'output window, operand 1, single buffered']
    #allocation8 [shape = 's32[1]{0}', space=sflag, size = 0x4, scoped, tag = 'scoped memory for tpu_custom_call.1']
    %19 = vsyncpa [#allocation4], 0
    %20 = vsyncpa [#allocation5], 0
    %21 = vsyncpa [#allocation8], 0
    // Predicated region
    $region2: #{tpu_custom_call.1} parent=1 // pred_check
      _
    $region3: #{tpu_custom_call.1} parent=1 // pred_check_branch
      %23 = sbr.rel (0) target = $region5
    $region4: #{tpu_custom_call.1} parent=1 // pred_region
      _
    $region5: #{tpu_custom_call.1} parent=1 // pred_fallthru
      _
    // Predicated region
    $region6: #{tpu_custom_call.1} parent=1 // pred_check
      _
    $region7: #{tpu_custom_call.1} parent=1 // pred_check_branch
      %25 = sbr.rel (0) target = $region9
    $region8: #{tpu_custom_call.1} parent=1 // pred_region
      _
    $region9: #{tpu_custom_call.1} parent=1 // pred_fallthru
      _
    // Predicated region
    $region10: #{tpu_custom_call.1} parent=1 // pred_check
      _
    $region11: #{tpu_custom_call.1} parent=1 // pred_check_branch
      %27 = sbr.rel (0) target = $region13
    $region12: #{tpu_custom_call.1} parent=1 // pred_region
      _
    $region13: #{tpu_custom_call.1} parent=1 // pred_fallthru
      _
    // Predicated region
    $region14: #{tpu_custom_call.1} parent=1 // pred_check
      _
    $region15: #{tpu_custom_call.1} parent=1 // pred_check_branch
      %29 = sbr.rel (0) target = $region17
    $region16: #{tpu_custom_call.1} parent=1 // pred_region
      _
    $region17: #{tpu_custom_call.1} parent=1 // pred_fallthru
      _
    // Predicated region
    $region18: #{tpu_custom_call.1} parent=1 // pred_check
      _
    $region19: #{tpu_custom_call.1} parent=1 // pred_check_branch
      %31 = sbr.rel (0) target = $region21
    $region20: #{tpu_custom_call.1} parent=1 // pred_region
      _
    $region21: #{tpu_custom_call.1} parent=1 // pred_fallthru
      _
    // Predicated region
    $region22: #{tpu_custom_call.1} parent=1 // pred_check
      _
    $region23: #{tpu_custom_call.1} parent=1 // pred_check_branch
      %33 = sbr.rel (0) target = $region25
    $region24: #{tpu_custom_call.1} parent=1 // pred_region
      _
    $region25: #{tpu_custom_call.1} parent=1 // pred_fallthru
      _
    // Predicated region
    $region26: #{tpu_custom_call.1} parent=1 // pred_check
      _
    $region27: #{tpu_custom_call.1} parent=1 // pred_check_branch
      %35 = sbr.rel (0) target = $region29
    $region28: #{tpu_custom_call.1} parent=1 // pred_region
      _
    $region29: #{tpu_custom_call.1} parent=1 // pred_fallthru
      _
    // Predicated region
    $region30: #{tpu_custom_call.1} parent=1 // pred_check
      _
    $region31: #{tpu_custom_call.1} parent=1 // pred_check_branch
      %37 = sbr.rel (0) target = $region33
    $region32: #{tpu_custom_call.1} parent=1 // pred_region
      %s39 = ssub.s32 1024, 1024
      %40 = vsyncadd [#allocation4], %s39
      %s41 = sshll.u32 [#allocation3], 4
      %s42 = int_to_ptr.vmem [resolvable:$true] %s41
      %47 = dma.hbm_to_vmem [thread:$0]  %s7, 1024, %s42, [#allocation4], 64, 64, 4
    $region33: #{tpu_custom_call.1} parent=1 // pred_fallthru
      _
    // Predicated region
    $region34: #{tpu_custom_call.1} parent=1 // pred_check
      _
    $region35: #{tpu_custom_call.1} parent=1 // pred_check_branch
      %49 = sbr.rel (0) target = $region37
    $region36: #{tpu_custom_call.1} parent=1 // pred_region
      _
    $region37: #{tpu_custom_call.1} parent=1 // pred_fallthru
      _
    // Predicated region
    $region38: #{tpu_custom_call.1} parent=1 // pred_check
      _
    $region39: #{tpu_custom_call.1} parent=1 // pred_check_branch
      %51 = sbr.rel (0) target = $region41
    $region40: #{tpu_custom_call.1} parent=1 // pred_region
      _
    $region41: #{tpu_custom_call.1} parent=1 // pred_fallthru
      _
    // Predicated region
    $region42: #{tpu_custom_call.1} parent=1 // pred_check
      _
    $region43: #{tpu_custom_call.1} parent=1 // pred_check_branch
      %53 = sbr.rel (0) target = $region45
    $region44: #{tpu_custom_call.1} parent=1 // pred_region
      _
    $region45: #{tpu_custom_call.1} parent=1 // pred_fallthru
      _
    // Predicated region
    $region46: #{tpu_custom_call.1} parent=1 // pred_check
      _
    $region47: #{tpu_custom_call.1} parent=1 // pred_check_branch
      %55 = sbr.rel (0) target = $region49
    $region48: #{tpu_custom_call.1} parent=1 // pred_region
      %56 = dma.done [#allocation4], 1024
    $region49: #{tpu_custom_call.1} parent=1 // pred_fallthru
      _
    %s58 = sld [smem:[#allocation2]]
    %v59 = vld [vmem:[%s2] sm:$0xff]
    %v60 = vld [vmem:[%s2 + $0x8] sm:$0xff]
    %v61 = vld [vmem:[%s2 + $0x10] sm:$0xff]
    %v62 = vld [vmem:[%s2 + $0x18] sm:$0xff]
    %v63 = vld [vmem:[%s2 + $0x20] sm:$0xff]
    %v64 = vld [vmem:[%s2 + $0x28] sm:$0xff]
    %v65 = vld [vmem:[%s2 + $0x30] sm:$0xff]
    %v66 = vld [vmem:[%s2 + $0x38] sm:$0xff]
    %v67 = vxor.u32 %v59, 2147483648
    %v68 = vxor.u32 %v60, 2147483648
    %v69 = vxor.u32 %v61, 2147483648
    %v70 = vxor.u32 %v62, 2147483648
    %v71 = vxor.u32 %v63, 2147483648
    %v72 = vxor.u32 %v64, 2147483648
    %v73 = vxor.u32 %v65, 2147483648
    %v74 = vxor.u32 %v66, 2147483648
    %v75 = vmul.f32 %v67, 1.442695
    %v76 = vpow.pop %v75
    %v77 = vmul.f32 %v68, 1.442695
    %v78 = vpow.pop %v77
    %v79 = vmul.f32 %v69, 1.442695
    %v80 = vpow.pop %v79
    %v81 = vmul.f32 %v70, 1.442695
    %v82 = vpow.pop %v81
    %v83 = vmul.f32 %v71, 1.442695
    %v84 = vpow.pop %v83
    %v85 = vmul.f32 %v72, 1.442695
    %v86 = vpow.pop %v85
    %v87 = vmul.f32 %v73, 1.442695
    %v88 = vpow.pop %v87
    %v89 = vmul.f32 %v74, 1.442695
    %v90 = vpow.pop %v89
    %v91 = vadd.f32 %v76, 1.0
    %v92 = vadd.f32 %v78, 1.0
    %v93 = vadd.f32 %v80, 1.0
    %v94 = vadd.f32 %v82, 1.0
    %v95 = vadd.f32 %v84, 1.0
    %v96 = vadd.f32 %v86, 1.0
    %v97 = vadd.f32 %v88, 1.0
    %v98 = vadd.f32 %v90, 1.0
    %v99 = vrcp.pop %v91
    %v100 = vmul.f32 1.0, %v99
    %v101 = vrcp.pop %v92
    %v102 = vmul.f32 1.0, %v101
    %v103 = vrcp.pop %v93
    %v104 = vmul.f32 1.0, %v103
    %v105 = vrcp.pop %v94
    %v106 = vmul.f32 1.0, %v105
    %v107 = vrcp.pop %v95
    %v108 = vmul.f32 1.0, %v107
    %v109 = vrcp.pop %v96
    %v110 = vmul.f32 1.0, %v109
    %v111 = vrcp.pop %v97
    %v112 = vmul.f32 1.0, %v111
    %v113 = vrcp.pop %v98
    %v114 = vmul.f32 1.0, %v113
    %115 = vxpose.xlu0.b32.start [1/16] %v100, 128
    %116 = vxpose.xlu0.b32.cont [2/16] %v102, 128
    %117 = vxpose.xlu0.b32.cont [3/16] %v104, 128
    %118 = vxpose.xlu0.b32.cont [4/16] %v106, 128
    %119 = vxpose.xlu0.b32.cont [5/16] %v108, 128
    %120 = vxpose.xlu0.b32.cont [6/16] %v110, 128
    %121 = vxpose.xlu0.b32.cont [7/16] %v112, 128
    %122 = vxpose.xlu0.b32.cont [8/16] %v114, 128
    %123 = vxpose.xlu0.b32.cont [9/16] 0.0, 128
    %124 = vxpose.xlu0.b32.cont [10/16] 0.0, 128
    %125 = vxpose.xlu0.b32.cont [11/16] 0.0, 128
    %126 = vxpose.xlu0.b32.cont [12/16] 0.0, 128
    %127 = vxpose.xlu0.b32.cont [13/16] 0.0, 128
    %128 = vxpose.xlu0.b32.cont [14/16] 0.0, 128
    %129 = vxpose.xlu0.b32.cont [15/16] 0.0, 128
    %130 = vxpose.xlu0.b32.end [16/16] 0.0, 128
    %v131 = vpop.trf.xlu0
    %v132 = vpop.trf.xlu0
    %v133 = vpop.trf.xlu0
    %v134 = vpop.trf.xlu0
    %v135 = vpop.trf.xlu0
    %v136 = vpop.trf.xlu0
    %v137 = vpop.trf.xlu0
    %v138 = vpop.trf.xlu0
    %v139 = vpop.trf.xlu0
    %v140 = vpop.trf.xlu0
    %v141 = vpop.trf.xlu0
    %v142 = vpop.trf.xlu0
    %v143 = vpop.trf.xlu0
    %v144 = vpop.trf.xlu0
    %v145 = vpop.trf.xlu0
    %v146 = vpop.trf.xlu0
    %v147 = vadd.f32 %v100, %v131
    %v148 = vadd.f32 %v102, %v132
    %v149 = vadd.f32 %v104, %v133
    %v150 = vadd.f32 %v106, %v134
    %v151 = vadd.f32 %v108, %v135
    %v152 = vadd.f32 %v110, %v136
    %v153 = vadd.f32 %v112, %v137
    %v154 = vadd.f32 %v114, %v138
    %v155 = vmul.f32 %v147, 0.5
    %v156 = vmul.f32 %v148, 0.5
    %v157 = vmul.f32 %v149, 0.5
    %v158 = vmul.f32 %v150, 0.5
    %v159 = vmul.f32 %v151, 0.5
    %v160 = vmul.f32 %v152, 0.5
    %v161 = vmul.f32 %v153, 0.5
    %v162 = vmul.f32 %v154, 0.5
    %v163 = vlaneseq
    %v164 = vshrl.u32 %v163, 7
    %v165 = vadd.s32 %v164, 8
    %v166 = vadd.s32 %v164, 16
    %v167 = vadd.s32 %v164, 24
    %v168 = vadd.s32 %v164, 32
    %v169 = vadd.s32 %v164, 40
    %v170 = vadd.s32 %v164, 48
    %v171 = vadd.s32 %v164, 56
    %v172 = vlaneseq
    %v173 = vand.u32 %v172, 127
    %vm174 = vcmp.eq.s32.totalorder %v164, %v173
    %vm175 = vcmp.eq.s32.totalorder %v165, %v173
    %vm176 = vcmp.eq.s32.totalorder %v166, %v173
    %vm177 = vcmp.eq.s32.totalorder %v167, %v173
    %vm178 = vcmp.eq.s32.totalorder %v168, %v173
    %vm179 = vcmp.eq.s32.totalorder %v169, %v173
    %vm180 = vcmp.eq.s32.totalorder %v170, %v173
    %vm181 = vcmp.eq.s32.totalorder %v171, %v173
    %v182 = vld [vmem:[%s1] sm:$0xff]
    %v183 = vld [vmem:[%s1 + $0x8] sm:$0xff]
    %v184 = vld [vmem:[%s1 + $0x10] sm:$0xff]
    %v185 = vld [vmem:[%s1 + $0x18] sm:$0xff]
    %v186 = vld [vmem:[%s1 + $0x20] sm:$0xff]
    %v187 = vld [vmem:[%s1 + $0x28] sm:$0xff]
    %v188 = vld [vmem:[%s1 + $0x30] sm:$0xff]
    %v189 = vld [vmem:[%s1 + $0x38] sm:$0xff]
    %v190 = vmul.f32 %v182, %v155
    %v191 = vmul.f32 %v183, %v156
    %v192 = vmul.f32 %v184, %v157
    %v193 = vmul.f32 %v185, %v158
    %v194 = vmul.f32 %v186, %v159
    %v195 = vmul.f32 %v187, %v160
    %v196 = vmul.f32 %v188, %v161
    %v197 = vmul.f32 %v189, %v162
    %v198 = vsel %vm174, 0.0, %v190
    %v199 = vsel %vm175, 0.0, %v191
    %v200 = vsel %vm176, 0.0, %v192
    %v201 = vsel %vm177, 0.0, %v193
    %v202 = vsel %vm178, 0.0, %v194
    %v203 = vsel %vm179, 0.0, %v195
    %v204 = vsel %vm180, 0.0, %v196
    %v205 = vsel %vm181, 0.0, %v197
    %vm206 = vcmask 523264
    %207 = vst.msk [vmem:[#allocation6] sm:$0xff] %vm206, %v198
    %208 = vst.msk [vmem:[#allocation6 + $0x8] sm:$0xff] %vm206, %v199
    %209 = vst.msk [vmem:[#allocation6 + $0x10] sm:$0xff] %vm206, %v200
    %210 = vst.msk [vmem:[#allocation6 + $0x18] sm:$0xff] %vm206, %v201
    %211 = vst.msk [vmem:[#allocation6 + $0x20] sm:$0xff] %vm206, %v202
    %212 = vst.msk [vmem:[#allocation6 + $0x28] sm:$0xff] %vm206, %v203
    %213 = vst.msk [vmem:[#allocation6 + $0x30] sm:$0xff] %vm206, %v204
    %214 = vst.msk [vmem:[#allocation6 + $0x38] sm:$0xff] %vm206, %v205
    %v215 = vld [vmem:[%s4] sm:$0x1]
    %v216 = vxor.u32 %v215, 2147483648
    %v217 = vmul.f32 %v216, 1.442695
    %v218 = vpow.pop %v217
    %v219 = vadd.f32 %v218, 1.0
    %v220 = vrcp.pop %v219
    %v221 = vmul.f32 1.0, %v220
    %v222 = vld [vmem:[%s3] sm:$0xff]
    %v223 = vld [vmem:[%s3 + $0x8] sm:$0xff]
    %v224 = vld [vmem:[%s3 + $0x10] sm:$0xff]
    %v225 = vld [vmem:[%s3 + $0x18] sm:$0xff]
    %v226 = vld [vmem:[%s3 + $0x20] sm:$0xff]
    %v227 = vld [vmem:[%s3 + $0x28] sm:$0xff]
    %v228 = vld [vmem:[%s3 + $0x30] sm:$0xff]
    %v229 = vld [vmem:[%s3 + $0x38] sm:$0xff]
    %v231 = vlaneseq
    %v232 = vshrl.u32 %v231, 7
    %v233 = vsub.s32 0, %v232
    %v234 = vrot.slane %v221, %v233
    %v236 = vmul.f32 %v222, %v234
    %v237 = vmul.f32 %v223, %v234
    %v238 = vmul.f32 %v224, %v234
    %v239 = vmul.f32 %v225, %v234
    %v240 = vmul.f32 %v226, %v234
    %v241 = vmul.f32 %v227, %v234
    %v242 = vmul.f32 %v228, %v234
    %v243 = vmul.f32 %v229, %v234
    %v244 = vpack.c.bf16 %v199, %v198
    %v245 = vpack.c.bf16 %v201, %v200
    %v246 = vpack.c.bf16 %v203, %v202
    %v247 = vpack.c.bf16 %v205, %v204
    %v248 = vpack.c.bf16 %v237, %v236
    %v249 = vpack.c.bf16 %v239, %v238
    %v250 = vpack.c.bf16 %v241, %v240
    %v251 = vpack.c.bf16 %v243, %v242
    %v253 = vsel %vm206, %v244, 0
    %v256 = vsel %vm206, %v245, 0
    %v259 = vsel %vm206, %v246, 0
    %v262 = vsel %vm206, %v247, 0
    %264 = vmatprep.subr.bf16.mxu0 0
    %265 = vmatpush1.bf16.msra.mxu0 %v248
    %266 = vmatprep.subr.bf16.mxu0 0
    %267 = vmatpush1.bf16.msra.mxu0 %v249
    %268 = vmatprep.subr.bf16.mxu0 0
    %269 = vmatpush1.bf16.msra.mxu0 %v250
    %270 = vmatprep.subr.bf16.mxu0 0
    %271 = vmatpush1.bf16.msra.mxu0 %v251
    %272 = vmatprep.subr.bf16.mxu0 0
    %273 = vmatpush1.bf16.msra.mxu0 0
    %274 = vmatprep.subr.bf16.mxu0 0
    %275 = vmatpush1.bf16.msra.mxu0 0
    %276 = vmatprep.subr.bf16.mxu0 0
    %277 = vmatpush1.bf16.msra.mxu0 0
    %278 = vmatprep.subr.bf16.mxu0 0
    %279 = vmatpush1.bf16.msra.mxu0 0
    %280 = vmatprep.subr.bf16.mxu0 0
    %281 = vmatpush1.bf16.msra.mxu0 0
    %282 = vmatprep.subr.bf16.mxu0 0
    %283 = vmatpush1.bf16.msra.mxu0 0
    %284 = vmatprep.subr.bf16.mxu0 0
    %285 = vmatpush1.bf16.msra.mxu0 0
    %286 = vmatprep.subr.bf16.mxu0 0
    %287 = vmatpush1.bf16.msra.mxu0 0
    %288 = vmatprep.subr.bf16.mxu0 0
    %289 = vmatpush1.bf16.msra.mxu0 0
    %290 = vmatprep.subr.bf16.mxu0 0
    %291 = vmatpush1.bf16.msra.mxu0 0
    %292 = vmatprep.subr.bf16.mxu0 0
    %293 = vmatpush1.bf16.msra.mxu0 0
    %294 = vmatprep.subr.bf16.mxu0 0
    %295 = vmatpush1.bf16.msra.mxu0 0
    %296 = vmatprep.mubr.bf16.mxu0 0
    %297 = vmatmul.mubr.bf16.gmra.mrb[0].mxu0 %v253
    %v298 = vpop.f32.mrb[0].mxu0
    %v299 = vadd.f32 0.0, %v298
    %v300 = vpop.f32.mrb[0].mxu0
    %v301 = vpop.f32.mrb[0].mxu0
    %v302 = vadd.f32 0.0, %v301
    %v303 = vpop.f32.mrb[0].mxu0
    %304 = vmatprep.mubr.bf16.mxu0 0
    %305 = vmatmul.mubr.bf16.gmra.mrb[0].mxu0 %v256
    %v306 = vpop.f32.mrb[0].mxu0
    %v307 = vadd.f32 0.0, %v306
    %v308 = vpop.f32.mrb[0].mxu0
    %v309 = vpop.f32.mrb[0].mxu0
    %v310 = vadd.f32 0.0, %v309
    %v311 = vpop.f32.mrb[0].mxu0
    %312 = vmatprep.mubr.bf16.mxu0 0
    %313 = vmatmul.mubr.bf16.gmra.mrb[0].mxu0 %v259
    %v314 = vpop.f32.mrb[0].mxu0
    %v315 = vadd.f32 0.0, %v314
    %v316 = vpop.f32.mrb[0].mxu0
    %v317 = vpop.f32.mrb[0].mxu0
    %v318 = vadd.f32 0.0, %v317
    %v319 = vpop.f32.mrb[0].mxu0
    %320 = vmatprep.mubr.bf16.mxu0 0
    %321 = vmatmul.mubr.bf16.gmra.mrb[0].mxu0 %v262
    %v322 = vpop.f32.mrb[0].mxu0
    %v323 = vadd.f32 0.0, %v322
    %v324 = vpop.f32.mrb[0].mxu0
    %v325 = vpop.f32.mrb[0].mxu0
    %v326 = vadd.f32 0.0, %v325
    %v327 = vpop.f32.mrb[0].mxu0
    %328 = vdwg.mxu0
    %v329 = vpack.c.bf16 %v302, %v299
    %v330 = vpack.c.bf16 %v310, %v307
    %v331 = vpack.c.bf16 %v318, %v315
    %v332 = vpack.c.bf16 %v326, %v323
    %v333 = vld [vmem:[%s5] sm:$0xf]
    %v334 = vld [vmem:[%s5 + $0x4] sm:$0xf]
    %v335 = vld [vmem:[%s6] sm:$0x1]
    %v337 = vlaneseq
    %v338 = vshrl.u32 %v337, 7
    %v339 = vsub.s32 0, %v338
    %v340 = vrot.slane %v335, %v339
    %v344 = vunpack.c.l.b16 %v333
    %v345 = vunpack.c.l.b16 %v334
    %v346 = vpack.c.b16 %v345, %v344
    %vm348 = vcmask 130048
    %v350 = vsel %vm348, %v329, 0
    %v353 = vsel %vm348, %v330, 0
    %v356 = vsel %vm348, %v331, 0
    %v359 = vsel %vm348, %v332, 0
    %361 = vmatprep.subr.bf16.mxu0 0
    %362 = vmatpush1.bf16.msra.mxu0 %v346
    %363 = vmatprep.subr.bf16.mxu0 0
    %364 = vmatpush1.bf16.msra.mxu0 0
    %365 = vmatprep.subr.bf16.mxu0 0
    %366 = vmatpush1.bf16.msra.mxu0 0
    %367 = vmatprep.subr.bf16.mxu0 0
    %368 = vmatpush1.bf16.msra.mxu0 0
    %369 = vmatprep.subr.bf16.mxu0 0
    %370 = vmatpush1.bf16.msra.mxu0 0
    %371 = vmatprep.subr.bf16.mxu0 0
    %372 = vmatpush1.bf16.msra.mxu0 0
    %373 = vmatprep.subr.bf16.mxu0 0
    %374 = vmatpush1.bf16.msra.mxu0 0
    %375 = vmatprep.subr.bf16.mxu0 0
    %376 = vmatpush1.bf16.msra.mxu0 0
    %377 = vmatprep.subr.bf16.mxu0 0
    %378 = vmatpush1.bf16.msra.mxu0 0
    %379 = vmatprep.subr.bf16.mxu0 0
    %380 = vmatpush1.bf16.msra.mxu0 0
    %381 = vmatprep.subr.bf16.mxu0 0
    %382 = vmatpush1.bf16.msra.mxu0 0
    %383 = vmatprep.subr.bf16.mxu0 0
    %384 = vmatpush1.bf16.msra.mxu0 0
    %385 = vmatprep.subr.bf16.mxu0 0
    %386 = vmatpush1.bf16.msra.mxu0 0
    %387 = vmatprep.subr.bf16.mxu0 0
    %388 = vmatpush1.bf16.msra.mxu0 0
    %389 = vmatprep.subr.bf16.mxu0 0
    %390 = vmatpush1.bf16.msra.mxu0 0
    %391 = vmatprep.subr.bf16.mxu0 0
    %392 = vmatpush1.bf16.msra.mxu0 0
    %393 = vmatprep.mubr.bf16.mxu0 0
    %394 = vmatmul.mubr.bf16.gmra.mrb[0].mxu0 %v350
    %v395 = vpop.f32.mrb[0].mxu0
    %v396 = vadd.f32 %v340, %v395
    %v397 = vpop.f32.mrb[0].mxu0
    %v398 = vpop.f32.mrb[0].mxu0
    %v399 = vadd.f32 %v340, %v398
    %v400 = vpop.f32.mrb[0].mxu0
    %401 = vmatprep.mubr.bf16.mxu0 0
    %402 = vmatmul.mubr.bf16.gmra.mrb[0].mxu0 %v353
    %v403 = vpop.f32.mrb[0].mxu0
    %v404 = vadd.f32 %v340, %v403
    %v405 = vpop.f32.mrb[0].mxu0
    %v406 = vpop.f32.mrb[0].mxu0
    %v407 = vadd.f32 %v340, %v406
    %v408 = vpop.f32.mrb[0].mxu0
    %409 = vmatprep.mubr.bf16.mxu0 0
    %410 = vmatmul.mubr.bf16.gmra.mrb[0].mxu0 %v356
    %v411 = vpop.f32.mrb[0].mxu0
    %v412 = vadd.f32 %v340, %v411
    %v413 = vpop.f32.mrb[0].mxu0
    %v414 = vpop.f32.mrb[0].mxu0
    %v415 = vadd.f32 %v340, %v414
    %v416 = vpop.f32.mrb[0].mxu0
    %417 = vmatprep.mubr.bf16.mxu0 0
    %418 = vmatmul.mubr.bf16.gmra.mrb[0].mxu0 %v359
    %v419 = vpop.f32.mrb[0].mxu0
    %v420 = vadd.f32 %v340, %v419
    %v421 = vpop.f32.mrb[0].mxu0
    %v422 = vpop.f32.mrb[0].mxu0
    %v423 = vadd.f32 %v340, %v422
    %v424 = vpop.f32.mrb[0].mxu0
    %425 = vdwg.mxu0
    %v426 = vmax.f32 %v396, 0.0
    %v427 = vmax.f32 %v399, 0.0
    %v428 = vmax.f32 %v404, 0.0
    %v429 = vmax.f32 %v407, 0.0
    %v430 = vmax.f32 %v412, 0.0
    %v431 = vmax.f32 %v415, 0.0
    %v432 = vmax.f32 %v420, 0.0
    %v433 = vmax.f32 %v423, 0.0
    %s434 = scalar_lea.vmem [#allocation6], %s58
    %v435 = vld [vmem:[%s434] sm:$0x1]
    %v436 = vpack.c.bf16 %v435, %v435
    %v437 = vpack.c.bf16 %v427, %v426
    %v438 = vpack.c.bf16 %v429, %v428
    %v439 = vpack.c.bf16 %v431, %v430
    %v440 = vpack.c.bf16 %v433, %v432
    %v442 = vsel %vm206, %v436, 0
    %444 = vmatprep.subr.bf16.mxu0 0
    %445 = vmatpush1.bf16.msra.mxu0 %v437
    %446 = vmatprep.subr.bf16.mxu0 0
    %447 = vmatpush1.bf16.msra.mxu0 %v438
    %448 = vmatprep.subr.bf16.mxu0 0
    %449 = vmatpush1.bf16.msra.mxu0 %v439
    %450 = vmatprep.subr.bf16.mxu0 0
    %451 = vmatpush1.bf16.msra.mxu0 %v440
    %452 = vmatprep.subr.bf16.mxu0 0
    %453 = vmatpush1.bf16.msra.mxu0 0
    %454 = vmatprep.subr.bf16.mxu0 0
    %455 = vmatpush1.bf16.msra.mxu0 0
    %456 = vmatprep.subr.bf16.mxu0 0
    %457 = vmatpush1.bf16.msra.mxu0 0
    %458 = vmatprep.subr.bf16.mxu0 0
    %459 = vmatpush1.bf16.msra.mxu0 0
    %460 = vmatprep.subr.bf16.mxu0 0
    %461 = vmatpush1.bf16.msra.mxu0 0
    %462 = vmatprep.subr.bf16.mxu0 0
    %463 = vmatpush1.bf16.msra.mxu0 0
    %464 = vmatprep.subr.bf16.mxu0 0
    %465 = vmatpush1.bf16.msra.mxu0 0
    %466 = vmatprep.subr.bf16.mxu0 0
    %467 = vmatpush1.bf16.msra.mxu0 0
    %468 = vmatprep.subr.bf16.mxu0 0
    %469 = vmatpush1.bf16.msra.mxu0 0
    %470 = vmatprep.subr.bf16.mxu0 0
    %471 = vmatpush1.bf16.msra.mxu0 0
    %472 = vmatprep.subr.bf16.mxu0 0
    %473 = vmatpush1.bf16.msra.mxu0 0
    %474 = vmatprep.subr.bf16.mxu0 0
    %475 = vmatpush1.bf16.msra.mxu0 0
    %476 = vmatprep.mubr.bf16.mxu0 0
    %477 = vmatmul.mubr.bf16.gmra.mrb[0].mxu0 %v442
    %v478 = vpop.f32.mrb[0].mxu0
    %v479 = vadd.f32 0.0, %v478
    %v480 = vpop.f32.mrb[0].mxu0
    %v481 = vpop.f32.mrb[0].mxu0
    %v482 = vpop.f32.mrb[0].mxu0
    %483 = vdwg.mxu0
    %v484 = vpack.c.bf16 %v479, %v479
    %v485 = vld [vmem:[#allocation3] sm:$0xf]
    %v486 = vld [vmem:[#allocation3 + $0x4] sm:$0xf]
    %v487 = vld [vmem:[#allocation3 + $0x8] sm:$0xf]
    %v488 = vld [vmem:[#allocation3 + $0xc] sm:$0xf]
    %v489 = vld [vmem:[#allocation3 + $0x10] sm:$0xf]
    %v490 = vld [vmem:[#allocation3 + $0x14] sm:$0xf]
    %v491 = vld [vmem:[#allocation3 + $0x18] sm:$0xf]
    %v492 = vld [vmem:[#allocation3 + $0x1c] sm:$0xf]
    %v493 = vld [vmem:[#allocation3 + $0x20] sm:$0xf]
    %v494 = vld [vmem:[#allocation3 + $0x24] sm:$0xf]
    %v495 = vld [vmem:[#allocation3 + $0x28] sm:$0xf]
    %v496 = vld [vmem:[#allocation3 + $0x2c] sm:$0xf]
    %v497 = vld [vmem:[#allocation3 + $0x30] sm:$0xf]
    %v498 = vld [vmem:[#allocation3 + $0x34] sm:$0xf]
    %v499 = vld [vmem:[#allocation3 + $0x38] sm:$0xf]
    %v500 = vld [vmem:[#allocation3 + $0x3c] sm:$0xf]
    %v501 = vld [vmem:[%s8] sm:$0x1]
    %v518 = vunpack.c.l.b16 %v485
    %v519 = vunpack.c.l.b16 %v486
    %v520 = vunpack.c.l.b16 %v487
    %v521 = vunpack.c.l.b16 %v488
    %v522 = vunpack.c.l.b16 %v489
    %v523 = vunpack.c.l.b16 %v490
    %v524 = vunpack.c.l.b16 %v491
    %v525 = vunpack.c.l.b16 %v492
    %v526 = vunpack.c.l.b16 %v493
    %v527 = vunpack.c.l.b16 %v494
    %v528 = vunpack.c.l.b16 %v495
    %v529 = vunpack.c.l.b16 %v496
    %v530 = vunpack.c.l.b16 %v497
    %v531 = vunpack.c.l.b16 %v498
    %v532 = vunpack.c.l.b16 %v499
    %v533 = vunpack.c.l.b16 %v500
    %v534 = vpack.c.b16 %v519, %v518
    %v535 = vpack.c.b16 %v521, %v520
    %v536 = vpack.c.b16 %v523, %v522
    %v537 = vpack.c.b16 %v525, %v524
    %v538 = vpack.c.b16 %v527, %v526
    %v539 = vpack.c.b16 %v529, %v528
    %v540 = vpack.c.b16 %v531, %v530
    %v541 = vpack.c.b16 %v533, %v532
    %550 = vmatprep.subr.bf16.mxu0 0
    %551 = vmatpush1.bf16.msra.mxu0 %v534
    %552 = vmatprep.subr.bf16.mxu0 0
    %553 = vmatpush1.bf16.msra.mxu0 %v535
    %554 = vmatprep.subr.bf16.mxu0 0
    %555 = vmatpush1.bf16.msra.mxu0 %v536
    %556 = vmatprep.subr.bf16.mxu0 0
    %557 = vmatpush1.bf16.msra.mxu0 %v537
    %558 = vmatprep.subr.bf16.mxu0 0
    %559 = vmatpush1.bf16.msra.mxu0 %v538
    %560 = vmatprep.subr.bf16.mxu0 0
    %561 = vmatpush1.bf16.msra.mxu0 %v539
    %562 = vmatprep.subr.bf16.mxu0 0
    %563 = vmatpush1.bf16.msra.mxu0 %v540
    %564 = vmatprep.subr.bf16.mxu0 0
    %565 = vmatpush1.bf16.msra.mxu0 %v541
    %566 = vmatprep.subr.bf16.mxu0 0
    %567 = vmatpush1.bf16.msra.mxu0 0
    %568 = vmatprep.subr.bf16.mxu0 0
    %569 = vmatpush1.bf16.msra.mxu0 0
    %570 = vmatprep.subr.bf16.mxu0 0
    %571 = vmatpush1.bf16.msra.mxu0 0
    %572 = vmatprep.subr.bf16.mxu0 0
    %573 = vmatpush1.bf16.msra.mxu0 0
    %574 = vmatprep.subr.bf16.mxu0 0
    %575 = vmatpush1.bf16.msra.mxu0 0
    %576 = vmatprep.subr.bf16.mxu0 0
    %577 = vmatpush1.bf16.msra.mxu0 0
    %578 = vmatprep.subr.bf16.mxu0 0
    %579 = vmatpush1.bf16.msra.mxu0 0
    %580 = vmatprep.subr.bf16.mxu0 0
    %581 = vmatpush1.bf16.msra.mxu0 0
    %582 = vmatprep.mubr.bf16.mxu0 0
    %583 = vmatmul.mubr.bf16.gmra.mrb[0].mxu0 %v484
    %v584 = vpop.f32.mrb[0].mxu0
    %v585 = vadd.f32 %v501, %v584
    %v586 = vpop.f32.mrb[0].mxu0
    %v587 = vpop.f32.mrb[0].mxu0
    %v588 = vpop.f32.mrb[0].mxu0
    %589 = vdwg.mxu0
    %v590 = vmax.f32 %v585, 0.0
    %v591 = vpack.c.bf16 %v590, %v590
    %v592 = vld [vmem:[%s9] sm:$0xf]
    %v593 = vld [vmem:[%s9 + $0x4] sm:$0xf]
    %v594 = vld [vmem:[%s9 + $0x8] sm:$0xf]
    %v595 = vld [vmem:[%s9 + $0xc] sm:$0xf]
    %v596 = vld [vmem:[%s9 + $0x10] sm:$0xf]
    %v597 = vld [vmem:[%s9 + $0x14] sm:$0xf]
    %v598 = vld [vmem:[%s9 + $0x18] sm:$0xf]
    %v599 = vld [vmem:[%s9 + $0x1c] sm:$0xf]
    %v600 = vld [vmem:[%s9 + $0x20] sm:$0xf]
    %v601 = vld [vmem:[%s9 + $0x24] sm:$0xf]
    %v602 = vld [vmem:[%s9 + $0x28] sm:$0xf]
    %v603 = vld [vmem:[%s9 + $0x2c] sm:$0xf]
    %v604 = vld [vmem:[%s9 + $0x30] sm:$0xf]
    %v605 = vld [vmem:[%s9 + $0x34] sm:$0xf]
    %v606 = vld [vmem:[%s9 + $0x38] sm:$0xf]
    %v607 = vld [vmem:[%s9 + $0x3c] sm:$0xf]
    %v608 = vld [vmem:[%s10] sm:$0x1]
    %v625 = vunpack.c.l.b16 %v592
    %v626 = vunpack.c.l.b16 %v593
    %v627 = vunpack.c.l.b16 %v594
    %v628 = vunpack.c.l.b16 %v595
    %v629 = vunpack.c.l.b16 %v596
    %v630 = vunpack.c.l.b16 %v597
    %v631 = vunpack.c.l.b16 %v598
    %v632 = vunpack.c.l.b16 %v599
    %v633 = vunpack.c.l.b16 %v600
    %v634 = vunpack.c.l.b16 %v601
    %v635 = vunpack.c.l.b16 %v602
    %v636 = vunpack.c.l.b16 %v603
    %v637 = vunpack.c.l.b16 %v604
    %v638 = vunpack.c.l.b16 %v605
    %v639 = vunpack.c.l.b16 %v606
    %v640 = vunpack.c.l.b16 %v607
    %v641 = vpack.c.b16 %v626, %v625
    %v642 = vpack.c.b16 %v628, %v627
    %v643 = vpack.c.b16 %v630, %v629
    %v644 = vpack.c.b16 %v632, %v631
    %v645 = vpack.c.b16 %v634, %v633
    %v646 = vpack.c.b16 %v636, %v635
    %v647 = vpack.c.b16 %v638, %v637
    %v648 = vpack.c.b16 %v640, %v639
    %657 = vmatprep.subr.bf16.mxu0 0
    %658 = vmatpush1.bf16.msra.mxu0 %v641
    %659 = vmatprep.subr.bf16.mxu0 0
    %660 = vmatpush1.bf16.msra.mxu0 %v642
    %661 = vmatprep.subr.bf16.mxu0 0
    %662 = vmatpush1.bf16.msra.mxu0 %v643
    %663 = vmatprep.subr.bf16.mxu0 0
    %664 = vmatpush1.bf16.msra.mxu0 %v644
    %665 = vmatprep.subr.bf16.mxu0 0
    %666 = vmatpush1.bf16.msra.mxu0 %v645
    %667 = vmatprep.subr.bf16.mxu0 0
    %668 = vmatpush1.bf16.msra.mxu0 %v646
    %669 = vmatprep.subr.bf16.mxu0 0
    %670 = vmatpush1.bf16.msra.mxu0 %v647
    %671 = vmatprep.subr.bf16.mxu0 0
    %672 = vmatpush1.bf16.msra.mxu0 %v648
    %673 = vmatprep.subr.bf16.mxu0 0
    %674 = vmatpush1.bf16.msra.mxu0 0
    %675 = vmatprep.subr.bf16.mxu0 0
    %676 = vmatpush1.bf16.msra.mxu0 0
    %677 = vmatprep.subr.bf16.mxu0 0
    %678 = vmatpush1.bf16.msra.mxu0 0
    %679 = vmatprep.subr.bf16.mxu0 0
    %680 = vmatpush1.bf16.msra.mxu0 0
    %681 = vmatprep.subr.bf16.mxu0 0
    %682 = vmatpush1.bf16.msra.mxu0 0
    %683 = vmatprep.subr.bf16.mxu0 0
    %684 = vmatpush1.bf16.msra.mxu0 0
    %685 = vmatprep.subr.bf16.mxu0 0
    %686 = vmatpush1.bf16.msra.mxu0 0
    %687 = vmatprep.subr.bf16.mxu0 0
    %688 = vmatpush1.bf16.msra.mxu0 0
    %689 = vmatprep.mubr.bf16.mxu0 0
    %690 = vmatmul.mubr.bf16.gmra.mrb[0].mxu0 %v591
    %v691 = vpop.f32.mrb[0].mxu0
    %v692 = vadd.f32 %v608, %v691
    %v693 = vpop.f32.mrb[0].mxu0
    %v694 = vpop.f32.mrb[0].mxu0
    %v695 = vpop.f32.mrb[0].mxu0
    %696 = vdwg.mxu0
    %vm697 = vcmask 57344
    %v698 = vsel %vm697, %v692, -inf
    %699 = vmax.xlane.f32.xlu0 %v698
    %v700 = vpop.xlane.xlu0 %699
    %v701 = vsub.f32 %v692, %v700
    %v702 = vmul.f32 %v701, 1.442695
    %v703 = vpow.pop %v702
    %v704 = vsel %vm697, %v703, 0.0
    %705 = vadd.xlane.f32.xlu0 %v704
    %v706 = vpop.xlane.xlu0 %705
    %v707 = vrcp.pop %v706
    %v708 = vmul.f32 %v703, %v707
    %709 = vst.msk [vmem:[#allocation7] sm:$0x1] %vm697, %v708
    // Predicated region
    $region50: #{tpu_custom_call.1} parent=1 // pred_check
      _
    $region51: #{tpu_custom_call.1} parent=1 // pred_check_branch
      %711 = sbr.rel (0) target = $region53
    $region52: #{tpu_custom_call.1} parent=1 // pred_region
      %s713 = ssub.s32 1024, 1024
      %714 = vsyncadd [#allocation5], %s713
      %s715 = sshll.u32 [#allocation6], 4
      %s716 = int_to_ptr.vmem [resolvable:$true] %s715
      %721 = dma.vmem_to_hbm [thread:$0]  %s716, 1024, %s11, [#allocation5], 128, 128, 8
    $region53: #{tpu_custom_call.1} parent=1 // pred_fallthru
      _
    // Predicated region
    $region54: #{tpu_custom_call.1} parent=1 // pred_check
      _
    $region55: #{tpu_custom_call.1} parent=1 // pred_check_branch
      %723 = sbr.rel (0) target = $region57
    $region56: #{tpu_custom_call.1} parent=1 // pred_region
      %s725 = ssub.s32 16, 16
      %726 = vsyncadd [#allocation8], %s725
      %s728 = sshll.u32 [#allocation7], 4
      %s729 = int_to_ptr.vmem [resolvable:$true] %s728
      %731 = dma.vmem_to_hbm [thread:$0]  %s729, 16, %s12, [#allocation8]
    $region57: #{tpu_custom_call.1} parent=1 // pred_fallthru
      _
    // Predicated region
    $region58: #{tpu_custom_call.1} parent=1 // pred_check
      _
    $region59: #{tpu_custom_call.1} parent=1 // pred_check_branch
      %733 = sbr.rel (0) target = $region61
    $region60: #{tpu_custom_call.1} parent=1 // pred_region
      %734 = dma.done [#allocation5], 1024
    $region61: #{tpu_custom_call.1} parent=1 // pred_fallthru
      _
    // Predicated region
    $region62: #{tpu_custom_call.1} parent=1 // pred_check
      _
    $region63: #{tpu_custom_call.1} parent=1 // pred_check_branch
      %736 = sbr.rel (0) target = $region65
    $region64: #{tpu_custom_call.1} parent=1 // pred_region
      %737 = dma.done [#allocation8], 16
    $region65: #{tpu_custom_call.1} parent=1 // pred_fallthru
      _
    %738 = vsyncpa [#allocation4], 1
    %739 = vsyncpa [#allocation5], 1
    %740 = vsyncpa [#allocation8], 1

</llo_original>
